<compile_context>
chip_gen: v6e
topology: v6e:2x2x1
jax: 0.10.0
libtpu: 0.0.40
codegen_flags: <defaults>
</compile_context>

<pallas_src>
import functools

import jax
import jax.numpy as jnp
from jax import lax
from jax.experimental import pallas as pl
from jax.experimental.pallas import tpu as pltpu


def _round_up(a, m):
    return ((a + m - 1) // m) * m


def make_mlp_kernel(chunk):
    def mlp_kernel(x_ref, wpack_ref, b3_ref, w2_ref, o_ref):
        # x_ref    : (1, TB)   f32, batch on lanes
        # wpack_ref: (64, 4)   f32, columns = [w1 | b1 | b2 | w3]
        # b3_ref   : (1,)      f32 in SMEM
        # w2_ref   : (64, 64)  bf16 (out, in)
        # o_ref    : (1, TB)   f32
        wpack = wpack_ref[...]                 # hoisted out of the chunk loop
        w1 = wpack[:, 0:1]                     # (64, 1)
        b1 = wpack[:, 1:2]
        b2 = wpack[:, 2:3]
        w3 = wpack[:, 3:4]
        w2 = w2_ref[...]                       # (64, 64) bf16
        b3 = b3_ref[0]                         # scalar f32

        n_chunks = x_ref.shape[1] // chunk     # static

        def body(c, carry):
            off = pl.multiple_of(c * chunk, chunk)
            x = x_ref[:, pl.ds(off, chunk)]                               # (1, chunk)

            # fc1: in_features == 1 -> VPU broadcast-multiply (no degenerate K=1 matmul)
            h1 = jnp.maximum(w1 * x + b1, 0.0)                            # (64, chunk) f32

            # fc2: single-pass bf16 MXU matmul, f32 accumulation; batch fills N dim
            h2 = jnp.dot(w2, h1.astype(jnp.bfloat16),
                         preferred_element_type=jnp.float32)              # (64, chunk) f32
            h2 = jnp.maximum(h2 + b2, 0.0)

            # fc3: out_features == 1 -> weight-scaled sublane reduce; stays lane-dense
            out = jnp.sum(w3 * h2, axis=0, keepdims=True) + b3            # (1, chunk)
            o_ref[:, pl.ds(off, chunk)] = out.astype(o_ref.dtype)
            return carry

        lax.fori_loop(0, n_chunks, body, 0, unroll=True)

    return mlp_kernel


def toy_model_forward(x, params, *, tile_b=2048, chunk=256, min_grid_steps=4):
    """x: (B, 1) float32. params: dict from init_params. Returns (B, 1) float32."""
    assert chunk % 128 == 0, "chunk must be a multiple of the 128-lane width"
    B = x.shape[0]

    # Adaptive tile: keep >= min_grid_steps steps on the parallel grid axis when the
    # batch allows it (v7x shards this axis across its 2 TensorCores), and keep the
    # tile a multiple of the in-kernel chunk.
    tile_b = max(chunk, min(_round_up(tile_b, chunk),
                            _round_up(pl.cdiv(B, min_grid_steps), chunk)))
    B_pad = _round_up(B, tile_b)
    grid = (B_pad // tile_b,)

    # Lay the batch out as a lane-dense (1, B_pad) slab.
    xf = x.reshape(-1)
    if B_pad != B:
        xf = jnp.pad(xf, (0, B_pad - B))
    x2 = xf.reshape(1, B_pad)

    # Pack the tiny per-feature params into one block; b3 goes to SMEM; w2 to bf16.
    wpack = jnp.concatenate(
        [params["w1"], params["b1"], params["b2"], params["w3"]], axis=1
    ).astype(jnp.float32)                                   # (64, 4)
    b3 = params["b3"].reshape((1,)).astype(jnp.float32)     # (1,)
    w2_bf16 = params["w2"].astype(jnp.bfloat16)             # (64, 64)

    const = lambda i: (0, 0)   # weights replicated across the batch grid

    flops_per_elem = 2 * 64 * 64 + 6 * 64 + 2   # fc2 matmul + fc1/relu/bias + fc3 reduce
    cost = pl.CostEstimate(
        flops=B_pad * flops_per_elem,
        transcendentals=0,
        bytes_accessed=4 * 2 * B_pad + 4 * (64 * 4 + 1) + 2 * 64 * 64,
    )

    out2 = pl.pallas_call(
        make_mlp_kernel(chunk),
        out_shape=jax.ShapeDtypeStruct((1, B_pad), jnp.float32),
        grid_spec=pltpu.PrefetchScalarGridSpec(
            num_scalar_prefetch=0,
            grid=grid,
            in_specs=[
                pl.BlockSpec((1, tile_b), lambda i: (0, i)),             # x slab
                pl.BlockSpec((64, 4), const),                            # [w1|b1|b2|w3]
                pl.BlockSpec(memory_space=pltpu.MemorySpace.SMEM),       # b3 scalar
                pl.BlockSpec((64, 64), const),                           # w2 (bf16)
            ],
            out_specs=pl.BlockSpec((1, tile_b), lambda i: (0, i)),
        ),
        compiler_params=pltpu.CompilerParams(
            dimension_semantics=("parallel",),
        ),
        cost_estimate=cost,
    )(x2, wpack, b3, w2_bf16)

    return out2.reshape(-1)[:B].reshape(B, 1)


def init_params(key):
    """Deterministic init mimicking nn.Linear default (uniform(-1/sqrt(fan_in), +))."""
    k1, k2, k3, k4, k5, k6 = jax.random.split(key, 6)

    def uni(k, shape, fan_in):
        bound = 1.0 / jnp.sqrt(jnp.float32(fan_in))
        return jax.random.uniform(k, shape, jnp.float32, -bound, bound)

    # fc1/fc2 weights kept in PyTorch (out, in) layout; fc3 weight stored as a column.
    w1 = uni(k1, (64, 1), 1)        # fc1: Linear(1, 64)
    b1 = uni(k2, (64, 1), 1)
    w2 = uni(k3, (64, 64), 64)      # fc2: Linear(64, 64)
    b2 = uni(k4, (64, 1), 64)
    w3 = uni(k5, (64, 1), 64)       # fc3: Linear(64, 1) weight as (in, out=1) column
    b3 = uni(k6, (1, 1), 64)
    return dict(w1=w1, b1=b1, w2=w2, b2=b2, w3=w3, b3=b3)


def reference_forward(x, p, *, mirror_kernel_precision=True):
    h1 = jnp.maximum(x @ p["w1"].T + p["b1"].T, 0.0)                      # (B, 64)
    if mirror_kernel_precision:
        # Same precision as the kernel: bf16 operands, f32 accumulation on the MXU.
        h2 = jnp.dot(h1.astype(jnp.bfloat16), p["w2"].astype(jnp.bfloat16).T,
                     preferred_element_type=jnp.float32)
    else:
        h2 = h1 @ p["w2"].T
    h2 = jnp.maximum(h2 + p["b2"].T, 0.0)                                 # (B, 64)
    return h2 @ p["w3"] + p["b3"]                                         # (B, 1)


if __name__ == "__main__":
    key = jax.random.PRNGKey(0)
    kx, kp = jax.random.split(key)

    B = 8   # small test batch; the wrapper pads/tiles to lane-dense slabs internally
    x = jax.random.normal(kx, (B, 1), dtype=jnp.float32)
    params = init_params(kp)

    out = toy_model_forward(x, params)
    out = jax.block_until_ready(out)
    assert out.shape == (B, 1)

    ref_same_prec = reference_forward(x, params, mirror_kernel_precision=True)
    ref_f32 = reference_forward(x, params, mirror_kernel_precision=False)
    assert jnp.allclose(out, ref_same_prec, atol=1e-4, rtol=1e-4), \
        "mismatch vs precision-matched JAX reference"
    assert jnp.allclose(out, ref_f32, atol=5e-2, rtol=5e-2), \
        "mismatch vs f32 JAX reference (beyond bf16 matmul tolerance)"

    print("KERNEL_OK")
</pallas_src>

<mosaic_0001>
module attributes {stable_mosaic.version = 11 : i64} {
  func.func @mlp_kernel(%arg0: i32, %arg1: memref<1x256xf32, #tpu.memory_space<vmem>>, %arg2: memref<64x4xf32, #tpu.memory_space<vmem>>, %arg3: memref<1xf32, #tpu.memory_space<smem>>, %arg4: memref<64x64xbf16, #tpu.memory_space<vmem>>, %arg5: memref<1x256xf32, #tpu.memory_space<vmem>>) attributes {dimension_semantics = [#tpu.dimension_semantics<parallel>], iteration_bounds = array<i64: 1>, scalar_prefetch = 0 : i64, scratch_operands = 0 : i64, tpu.core_type = #tpu.core_type<tc>, window_params = [{transform_indices = @transform_0, window_bounds = array<i64: 1, 256>}, {pipeline_mode = #tpu.pipeline_mode<synchronous>, transform_indices = @transform_1, window_bounds = array<i64: 64, 4>}, {transform_indices = @transform_2, window_bounds = array<i64: 1>}, {pipeline_mode = #tpu.pipeline_mode<synchronous>, transform_indices = @transform_3, window_bounds = array<i64: 64, 64>}, {transform_indices = @transform_4, window_bounds = array<i64: 1, 256>}]} {
    %c0 = arith.constant 0 : index
    %c0_0 = arith.constant 0 : index
    %0 = vector.load %arg2[%c0, %c0_0] : memref<64x4xf32, #tpu.memory_space<vmem>>, vector<64x4xf32>
    %1 = vector.extract_strided_slice %0 {offsets = [0, 0], sizes = [64, 1], strides = [1, 1]} : vector<64x4xf32> to vector<64x1xf32>
    %2 = vector.extract_strided_slice %0 {offsets = [0, 1], sizes = [64, 1], strides = [1, 1]} : vector<64x4xf32> to vector<64x1xf32>
    %3 = vector.extract_strided_slice %0 {offsets = [0, 2], sizes = [64, 1], strides = [1, 1]} : vector<64x4xf32> to vector<64x1xf32>
    %4 = vector.extract_strided_slice %0 {offsets = [0, 3], sizes = [64, 1], strides = [1, 1]} : vector<64x4xf32> to vector<64x1xf32>
    %c0_1 = arith.constant 0 : index
    %c0_2 = arith.constant 0 : index
    %5 = vector.load %arg4[%c0_1, %c0_2] : memref<64x64xbf16, #tpu.memory_space<vmem>>, vector<64x64xbf16>
    %c0_3 = arith.constant 0 : index
    %6 = memref.load %arg3[%c0_3] : memref<1xf32, #tpu.memory_space<smem>>
    %c0_i32 = arith.constant 0 : i32
    %c256_i32 = arith.constant 256 : i32
    %7 = arith.muli %c0_i32, %c256_i32 : i32
    %8 = tpu.assume_multiple %7, 256 : i32
    %c0_4 = arith.constant 0 : index
    %9 = arith.index_cast %8 : i32 to index
    %10 = vector.load %arg1[%c0_4, %9] : memref<1x256xf32, #tpu.memory_space<vmem>>, vector<1x256xf32>
    %11 = vector.broadcast %1 : vector<64x1xf32> to vector<64x256xf32>
    %12 = vector.broadcast %10 : vector<1x256xf32> to vector<64x256xf32>
    %13 = arith.mulf %11, %12 : vector<64x256xf32>
    %14 = vector.broadcast %2 : vector<64x1xf32> to vector<64x256xf32>
    %15 = arith.addf %13, %14 : vector<64x256xf32>
    %cst = arith.constant 0.000000e+00 : f32
    %16 = vector.broadcast %cst : f32 to vector<64x256xf32>
    %17 = arith.maximumf %15, %16 : vector<64x256xf32>
    %18 = arith.truncf %17 : vector<64x256xf32> to vector<64x256xbf16>
    %cst_5 = arith.constant dense<0.000000e+00> : vector<64x256xf32>
    %19 = tpu.matmul %5, %18, %cst_5 {dimension_numbers = #tpu.dot_dimension_numbers<[1], [0], [0], [1], [0, 0, 1, 1], [], []>} : vector<64x64xbf16>, vector<64x256xbf16>, vector<64x256xf32> -> vector<64x256xf32>
    %20 = vector.broadcast %3 : vector<64x1xf32> to vector<64x256xf32>
    %21 = arith.addf %19, %20 : vector<64x256xf32>
    %cst_6 = arith.constant 0.000000e+00 : f32
    %22 = vector.broadcast %cst_6 : f32 to vector<64x256xf32>
    %23 = arith.maximumf %21, %22 : vector<64x256xf32>
    %24 = vector.broadcast %4 : vector<64x1xf32> to vector<64x256xf32>
    %25 = arith.mulf %24, %23 : vector<64x256xf32>
    %cst_7 = arith.constant dense<0.000000e+00> : vector<256xf32>
    %26 = vector.multi_reduction <add>, %25, %cst_7 [0] : vector<64x256xf32> to vector<256xf32>
    %27 = vector.shape_cast %26 : vector<256xf32> to vector<1x256xf32>
    %28 = vector.broadcast %6 : f32 to vector<1x256xf32>
    %29 = arith.addf %27, %28 : vector<1x256xf32>
    %c0_8 = arith.constant 0 : index
    %30 = arith.index_cast %8 : i32 to index
    %31 = vector.load %arg5[%c0_8, %30] : memref<1x256xf32, #tpu.memory_space<vmem>>, vector<1x256xf32>
    tpu.vector_store %arg5[%c0_8, %30], %29 {strides = array<i32>} : memref<1x256xf32, #tpu.memory_space<vmem>>, vector<1x256xf32>,
    %c1_i32 = arith.constant 1 : i32
    return
  }
  func.func @transform_0(%arg0: i32) -> (i32, i32) {
    %c0_i32 = arith.constant 0 : i32
    %c0_i32_0 = arith.constant 0 : i32
    return %c0_i32, %arg0 : i32, i32
  }
  func.func @transform_1(%arg0: i32) -> (i32, i32) {
    %c0_i32 = arith.constant 0 : i32
    %c0_i32_0 = arith.constant 0 : i32
    %c0_i32_1 = arith.constant 0 : i32
    return %c0_i32, %c0_i32_0 : i32, i32
  }
  func.func @transform_2(%arg0: i32) -> i32 {
    %c0_i32 = arith.constant 0 : i32
    %c0_i32_0 = arith.constant 0 : i32
    return %c0_i32 : i32
  }
  func.func @transform_3(%arg0: i32) -> (i32, i32) {
    %c0_i32 = arith.constant 0 : i32
    %c0_i32_0 = arith.constant 0 : i32
    %c0_i32_1 = arith.constant 0 : i32
    return %c0_i32, %c0_i32_0 : i32, i32
  }
  func.func @transform_4(%arg0: i32) -> (i32, i32) {
    %c0_i32 = arith.constant 0 : i32
    %c0_i32_0 = arith.constant 0 : i32
    return %c0_i32, %arg0 : i32, i32
  }
}

</mosaic_0001>

<llo_original>
// kernel: tpu_custom_call.1
$region0: #{tpu_custom_call.1}
  #allocation0 [shape = 'u32[]', space=smem, size = 0x4, offset = 0x4, fixed_abs, tag = 'smem constant byte address 0x4 - core index']
  #allocation1 [shape = 'u32[144,128]{1,0:T(1,128)}', space=vmem, size = 0x12000, scoped, tag = 'internal scratch']
  #allocation2 [shape = 'f32[1]{0:T(128)S(6)}', space=smem, size = 0x200, scoped, tag = 'scoped memory for tpu_custom_call.1']
  %s0 = inlined_call_operand.vmem [shape: f32[1,256], index: 0, kind: input, shape index: {}]
  %s1 = inlined_call_operand.vmem [shape: f32[64,4], index: 1, kind: input, shape index: {}]
  %s2 = inlined_call_operand.<no memory space> [shape: f32[1], index: 2, kind: input, shape index: {}]
  %s3 = inlined_call_operand.vmem [shape: bf16[64,64], index: 3, kind: input, shape index: {}]
  %s4 = inlined_call_operand.hbm [shape: f32[1,256], index: 4, kind: output, shape index: {}]
  %s5 = sld [smem:[#allocation0]]
  $region26: #{tpu_custom_call.1} parent=0
    _
  %s7 = ssub.s32 1, %s5
  %s8 = scalar_select 0, %s7, %s5
  %9 = sst [smem:[#allocation2]] %s2
  $region1: #{tpu_custom_call.1} parent=0
    #allocation3 [shape = 'u8[1024]{0}', space=vmem, size = 0x400, scoped, tag = 'output window, operand 0, single buffered']
    #allocation4 [shape = 's32[1]{0}', space=sflag, size = 0x4, scoped, tag = 'scoped memory for tpu_custom_call.1']
    %10 = vsyncpa [#allocation4], 0
    // Predicated region
    $region2: #{tpu_custom_call.1} parent=1 // pred_check
      _
    $region3: #{tpu_custom_call.1} parent=1 // pred_check_branch
      %12 = sbr.rel (0) target = $region5
    $region4: #{tpu_custom_call.1} parent=1 // pred_region
      _
    $region5: #{tpu_custom_call.1} parent=1 // pred_fallthru
      _
    // Predicated region
    $region6: #{tpu_custom_call.1} parent=1 // pred_check
      _
    $region7: #{tpu_custom_call.1} parent=1 // pred_check_branch
      %14 = sbr.rel (0) target = $region9
    $region8: #{tpu_custom_call.1} parent=1 // pred_region
      _
    $region9: #{tpu_custom_call.1} parent=1 // pred_fallthru
      _
    // Predicated region
    $region10: #{tpu_custom_call.1} parent=1 // pred_check
      _
    $region11: #{tpu_custom_call.1} parent=1 // pred_check_branch
      %16 = sbr.rel (0) target = $region13
    $region12: #{tpu_custom_call.1} parent=1 // pred_region
      _
    $region13: #{tpu_custom_call.1} parent=1 // pred_fallthru
      _
    // Predicated region
    $region14: #{tpu_custom_call.1} parent=1 // pred_check
      _
    $region15: #{tpu_custom_call.1} parent=1 // pred_check_branch
      %18 = sbr.rel (0) target = $region17
    $region16: #{tpu_custom_call.1} parent=1 // pred_region
      _
    $region17: #{tpu_custom_call.1} parent=1 // pred_fallthru
      _
    %v20 = vld [vmem:[%s1] sm:$0xff]
    %v21 = vld [vmem:[%s1 + $0x8] sm:$0xff]
    %v22 = vld [vmem:[%s1 + $0x10] sm:$0xff]
    %v23 = vld [vmem:[%s1 + $0x18] sm:$0xff]
    %v24 = vld [vmem:[%s1 + $0x20] sm:$0xff]
    %v25 = vld [vmem:[%s1 + $0x28] sm:$0xff]
    %v26 = vld [vmem:[%s1 + $0x30] sm:$0xff]
    %v27 = vld [vmem:[%s1 + $0x38] sm:$0xff]
    %v28 = vld [vmem:[%s3] sm:$0xf]
    %v29 = vld [vmem:[%s3 + $0x4] sm:$0xf]
    %v30 = vld [vmem:[%s3 + $0x8] sm:$0xf]
    %v31 = vld [vmem:[%s3 + $0xc] sm:$0xf]
    %v32 = vld [vmem:[%s3 + $0x10] sm:$0xf]
    %v33 = vld [vmem:[%s3 + $0x14] sm:$0xf]
    %v34 = vld [vmem:[%s3 + $0x18] sm:$0xf]
    %v35 = vld [vmem:[%s3 + $0x1c] sm:$0xf]
    %s36 = sld [smem:[#allocation2]]
    %v37 = vld [vmem:[%s0] sm:$0x3]
    %39 = vset.pattern.permute.xlu0 0
    %40 = vperm.xlu0 %39, %v20
    %v41 = vpop.permute.xlu0 %40
    %44 = vset.pattern.permute.xlu0 0
    %45 = vperm.xlu0 %44, %v21
    %v46 = vpop.permute.xlu0 %45
    %49 = vset.pattern.permute.xlu0 0
    %50 = vperm.xlu0 %49, %v22
    %v51 = vpop.permute.xlu0 %50
    %54 = vset.pattern.permute.xlu0 0
    %55 = vperm.xlu0 %54, %v23
    %v56 = vpop.permute.xlu0 %55
    %59 = vset.pattern.permute.xlu0 0
    %60 = vperm.xlu0 %59, %v24
    %v61 = vpop.permute.xlu0 %60
    %64 = vset.pattern.permute.xlu0 0
    %65 = vperm.xlu0 %64, %v25
    %v66 = vpop.permute.xlu0 %65
    %69 = vset.pattern.permute.xlu0 0
    %70 = vperm.xlu0 %69, %v26
    %v71 = vpop.permute.xlu0 %70
    %74 = vset.pattern.permute.xlu0 0
    %75 = vperm.xlu0 %74, %v27
    %v76 = vpop.permute.xlu0 %75
    %v79 = vlaneseq
    %v80 = vshrl.u32 %v79, 7
    %v81 = vsub.s32 0, %v80
    %v82 = vrot.slane %v37, %v81
    %v83 = vlaneseq
    %v84 = vshrl.u32 %v83, 7
    %v85 = vsub.s32 1, %v84
    %v86 = vrot.slane %v37, %v85
    %v89 = vmul.f32 %v41, %v82
    %v90 = vmul.f32 %v41, %v86
    %v91 = vmul.f32 %v46, %v82
    %v92 = vmul.f32 %v46, %v86
    %v93 = vmul.f32 %v51, %v82
    %v94 = vmul.f32 %v51, %v86
    %v95 = vmul.f32 %v56, %v82
    %v96 = vmul.f32 %v56, %v86
    %v97 = vmul.f32 %v61, %v82
    %v98 = vmul.f32 %v61, %v86
    %v99 = vmul.f32 %v66, %v82
    %v100 = vmul.f32 %v66, %v86
    %v101 = vmul.f32 %v71, %v82
    %v102 = vmul.f32 %v71, %v86
    %v103 = vmul.f32 %v76, %v82
    %v104 = vmul.f32 %v76, %v86
    %105 = vset.pattern.permute.xlu0 1
    %106 = vperm.xlu0 %105, %v20
    %v107 = vpop.permute.xlu0 %106
    %109 = vset.pattern.permute.xlu0 1
    %110 = vperm.xlu0 %109, %v21
    %v111 = vpop.permute.xlu0 %110
    %113 = vset.pattern.permute.xlu0 1
    %114 = vperm.xlu0 %113, %v22
    %v115 = vpop.permute.xlu0 %114
    %117 = vset.pattern.permute.xlu0 1
    %118 = vperm.xlu0 %117, %v23
    %v119 = vpop.permute.xlu0 %118
    %121 = vset.pattern.permute.xlu0 1
    %122 = vperm.xlu0 %121, %v24
    %v123 = vpop.permute.xlu0 %122
    %125 = vset.pattern.permute.xlu0 1
    %126 = vperm.xlu0 %125, %v25
    %v127 = vpop.permute.xlu0 %126
    %129 = vset.pattern.permute.xlu0 1
    %130 = vperm.xlu0 %129, %v26
    %v131 = vpop.permute.xlu0 %130
    %133 = vset.pattern.permute.xlu0 1
    %134 = vperm.xlu0 %133, %v27
    %v135 = vpop.permute.xlu0 %134
    %v137 = vadd.f32 %v89, %v107
    %v138 = vadd.f32 %v90, %v107
    %v139 = vadd.f32 %v91, %v111
    %v140 = vadd.f32 %v92, %v111
    %v141 = vadd.f32 %v93, %v115
    %v142 = vadd.f32 %v94, %v115
    %v143 = vadd.f32 %v95, %v119
    %v144 = vadd.f32 %v96, %v119
    %v145 = vadd.f32 %v97, %v123
    %v146 = vadd.f32 %v98, %v123
    %v147 = vadd.f32 %v99, %v127
    %v148 = vadd.f32 %v100, %v127
    %v149 = vadd.f32 %v101, %v131
    %v150 = vadd.f32 %v102, %v131
    %v151 = vadd.f32 %v103, %v135
    %v152 = vadd.f32 %v104, %v135
    %v153 = vmax.f32 %v137, 0.0
    %v154 = vmax.f32 %v138, 0.0
    %v155 = vmax.f32 %v139, 0.0
    %v156 = vmax.f32 %v140, 0.0
    %v157 = vmax.f32 %v141, 0.0
    %v158 = vmax.f32 %v142, 0.0
    %v159 = vmax.f32 %v143, 0.0
    %v160 = vmax.f32 %v144, 0.0
    %v161 = vmax.f32 %v145, 0.0
    %v162 = vmax.f32 %v146, 0.0
    %v163 = vmax.f32 %v147, 0.0
    %v164 = vmax.f32 %v148, 0.0
    %v165 = vmax.f32 %v149, 0.0
    %v166 = vmax.f32 %v150, 0.0
    %v167 = vmax.f32 %v151, 0.0
    %v168 = vmax.f32 %v152, 0.0
    %v169 = vpack.c.bf16 %v155, %v153
    %v170 = vpack.c.bf16 %v156, %v154
    %v171 = vpack.c.bf16 %v159, %v157
    %v172 = vpack.c.bf16 %v160, %v158
    %v173 = vpack.c.bf16 %v163, %v161
    %v174 = vpack.c.bf16 %v164, %v162
    %v175 = vpack.c.bf16 %v167, %v165
    %v176 = vpack.c.bf16 %v168, %v166
    %177 = vset.pattern.permute.xlu0 2
    %178 = vperm.xlu0 %177, %v20
    %v179 = vpop.permute.xlu0 %178
    %181 = vset.pattern.permute.xlu0 2
    %182 = vperm.xlu0 %181, %v21
    %v183 = vpop.permute.xlu0 %182
    %185 = vset.pattern.permute.xlu0 2
    %186 = vperm.xlu0 %185, %v22
    %v187 = vpop.permute.xlu0 %186
    %189 = vset.pattern.permute.xlu0 2
    %190 = vperm.xlu0 %189, %v23
    %v191 = vpop.permute.xlu0 %190
    %193 = vset.pattern.permute.xlu0 2
    %194 = vperm.xlu0 %193, %v24
    %v195 = vpop.permute.xlu0 %194
    %197 = vset.pattern.permute.xlu0 2
    %198 = vperm.xlu0 %197, %v25
    %v199 = vpop.permute.xlu0 %198
    %201 = vset.pattern.permute.xlu0 2
    %202 = vperm.xlu0 %201, %v26
    %v203 = vpop.permute.xlu0 %202
    %205 = vset.pattern.permute.xlu0 2
    %206 = vperm.xlu0 %205, %v27
    %v207 = vpop.permute.xlu0 %206
    %v217 = vunpack.c.l.b16 %v28
    %v218 = vunpack.c.l.b16 %v29
    %v219 = vunpack.c.l.b16 %v30
    %v220 = vunpack.c.l.b16 %v31
    %v221 = vunpack.c.l.b16 %v32
    %v222 = vunpack.c.l.b16 %v33
    %v223 = vunpack.c.l.b16 %v34
    %v224 = vunpack.c.l.b16 %v35
    %v225 = vpack.c.b16 %v218, %v217
    %v226 = vpack.c.b16 %v220, %v219
    %v227 = vpack.c.b16 %v222, %v221
    %v228 = vpack.c.b16 %v224, %v223
    %vm229 = vcmask 523264
    %v231 = vsel %vm229, %v225, 0
    %v234 = vsel %vm229, %v226, 0
    %v237 = vsel %vm229, %v227, 0
    %v240 = vsel %vm229, %v228, 0
    %242 = vmatprep.subr.bf16.mxu0 0
    %243 = vmatpush1.bf16.msra.mxu0 0
    %244 = vmatprep.subr.bf16.mxu0 0
    %245 = vmatpush1.bf16.msra.mxu0 0
    %246 = vmatprep.subr.bf16.mxu0 0
    %247 = vmatpush1.bf16.msra.mxu0 0
    %248 = vmatprep.subr.bf16.mxu0 0
    %249 = vmatpush1.bf16.msra.mxu0 0
    %250 = vmatprep.subr.bf16.mxu0 %v176
    %251 = vmatpush1.bf16.msra.mxu0 %v175
    %252 = vmatprep.subr.bf16.mxu0 %v174
    %253 = vmatpush1.bf16.msra.mxu0 %v173
    %254 = vmatprep.subr.bf16.mxu0 %v172
    %255 = vmatpush1.bf16.msra.mxu0 %v171
    %256 = vmatprep.subr.bf16.mxu0 %v170
    %257 = vmatpush1.bf16.msra.mxu0 %v169
    %258 = vmatprep.subr.bf16.mxu0 0
    %259 = vmatpush2.bf16.msra.mxu0 0
    %260 = vmatprep.subr.bf16.mxu0 0
    %261 = vmatpush2.bf16.msra.mxu0 0
    %262 = vmatprep.subr.bf16.mxu0 0
    %263 = vmatpush2.bf16.msra.mxu0 0
    %264 = vmatprep.subr.bf16.mxu0 0
    %265 = vmatpush2.bf16.msra.mxu0 0
    %266 = vmatprep.subr.bf16.mxu0 0
    %267 = vmatpush2.bf16.msra.mxu0 0
    %268 = vmatprep.subr.bf16.mxu0 0
    %269 = vmatpush2.bf16.msra.mxu0 0
    %270 = vmatprep.subr.bf16.mxu0 0
    %271 = vmatpush2.bf16.msra.mxu0 0
    %272 = vmatprep.subr.bf16.mxu0 0
    %273 = vmatpush2.bf16.msra.mxu0 0
    %274 = vmatprep.mubr.bf16.mxu0 0
    %275 = vmatmul.mubr.bf16.gmra.mxu0 %v231
    %v276 = vpop.f32.mrf.mxu0
    %v277 = vadd.f32 %v179, %v276
    %v278 = vpop.f32.mrf.mxu0
    %v279 = vadd.f32 %v179, %v278
    %v280 = vpop.f32.mrf.mxu0
    %v281 = vadd.f32 %v183, %v280
    %v282 = vpop.f32.mrf.mxu0
    %v283 = vadd.f32 %v183, %v282
    %284 = vmatprep.mubr.bf16.mxu0 0
    %285 = vmatmul.mubr.bf16.gmra.mxu0 %v234
    %v286 = vpop.f32.mrf.mxu0
    %v287 = vadd.f32 %v187, %v286
    %v288 = vpop.f32.mrf.mxu0
    %v289 = vadd.f32 %v187, %v288
    %v290 = vpop.f32.mrf.mxu0
    %v291 = vadd.f32 %v191, %v290
    %v292 = vpop.f32.mrf.mxu0
    %v293 = vadd.f32 %v191, %v292
    %294 = vmatprep.mubr.bf16.mxu0 0
    %295 = vmatmul.mubr.bf16.gmra.mxu0 %v237
    %v296 = vpop.f32.mrf.mxu0
    %v297 = vadd.f32 %v195, %v296
    %v298 = vpop.f32.mrf.mxu0
    %v299 = vadd.f32 %v195, %v298
    %v300 = vpop.f32.mrf.mxu0
    %v301 = vadd.f32 %v199, %v300
    %v302 = vpop.f32.mrf.mxu0
    %v303 = vadd.f32 %v199, %v302
    %304 = vmatprep.mubr.bf16.mxu0 0
    %305 = vmatmul.mubr.bf16.gmra.mxu0 %v240
    %v306 = vpop.f32.mrf.mxu0
    %v307 = vadd.f32 %v203, %v306
    %v308 = vpop.f32.mrf.mxu0
    %v309 = vadd.f32 %v203, %v308
    %v310 = vpop.f32.mrf.mxu0
    %v311 = vadd.f32 %v207, %v310
    %v312 = vpop.f32.mrf.mxu0
    %v313 = vadd.f32 %v207, %v312
    %314 = vdwg.mxu0
    %v315 = vmax.f32 %v277, 0.0
    %v316 = vmax.f32 %v279, 0.0
    %v317 = vmax.f32 %v281, 0.0
    %v318 = vmax.f32 %v283, 0.0
    %v319 = vmax.f32 %v287, 0.0
    %v320 = vmax.f32 %v289, 0.0
    %v321 = vmax.f32 %v291, 0.0
    %v322 = vmax.f32 %v293, 0.0
    %v323 = vmax.f32 %v297, 0.0
    %v324 = vmax.f32 %v299, 0.0
    %v325 = vmax.f32 %v301, 0.0
    %v326 = vmax.f32 %v303, 0.0
    %v327 = vmax.f32 %v307, 0.0
    %v328 = vmax.f32 %v309, 0.0
    %v329 = vmax.f32 %v311, 0.0
    %v330 = vmax.f32 %v313, 0.0
    %331 = vset.pattern.permute.xlu0 3
    %332 = vperm.xlu0 %331, %v20
    %v333 = vpop.permute.xlu0 %332
    %335 = vset.pattern.permute.xlu0 3
    %336 = vperm.xlu0 %335, %v21
    %v337 = vpop.permute.xlu0 %336
    %339 = vset.pattern.permute.xlu0 3
    %340 = vperm.xlu0 %339, %v22
    %v341 = vpop.permute.xlu0 %340
    %343 = vset.pattern.permute.xlu0 3
    %344 = vperm.xlu0 %343, %v23
    %v345 = vpop.permute.xlu0 %344
    %347 = vset.pattern.permute.xlu0 3
    %348 = vperm.xlu0 %347, %v24
    %v349 = vpop.permute.xlu0 %348
    %351 = vset.pattern.permute.xlu0 3
    %352 = vperm.xlu0 %351, %v25
    %v353 = vpop.permute.xlu0 %352
    %355 = vset.pattern.permute.xlu0 3
    %356 = vperm.xlu0 %355, %v26
    %v357 = vpop.permute.xlu0 %356
    %359 = vset.pattern.permute.xlu0 3
    %360 = vperm.xlu0 %359, %v27
    %v361 = vpop.permute.xlu0 %360
    %v363 = vmul.f32 %v333, %v315
    %v364 = vmul.f32 %v333, %v316
    %v365 = vmul.f32 %v337, %v317
    %v366 = vmul.f32 %v337, %v318
    %v367 = vmul.f32 %v341, %v319
    %v368 = vmul.f32 %v341, %v320
    %v369 = vmul.f32 %v345, %v321
    %v370 = vmul.f32 %v345, %v322
    %v371 = vmul.f32 %v349, %v323
    %v372 = vmul.f32 %v349, %v324
    %v373 = vmul.f32 %v353, %v325
    %v374 = vmul.f32 %v353, %v326
    %v375 = vmul.f32 %v357, %v327
    %v376 = vmul.f32 %v357, %v328
    %v377 = vmul.f32 %v361, %v329
    %v378 = vmul.f32 %v361, %v330
    %v379 = vadd.f32 %v363, %v365
    %v380 = vadd.f32 %v379, %v367
    %v381 = vadd.f32 %v380, %v369
    %v382 = vadd.f32 %v381, %v371
    %v383 = vadd.f32 %v382, %v373
    %v384 = vadd.f32 %v383, %v375
    %v385 = vadd.f32 %v384, %v377
    %v386 = vrot.slane %v385, 4
    %v387 = vadd.f32 %v385, %v386
    %v388 = vrot.slane %v387, 2
    %v389 = vadd.f32 %v387, %v388
    %v390 = vrot.slane %v389, 1
    %v391 = vadd.f32 %v389, %v390
    %v392 = vadd.f32 %v364, %v366
    %v393 = vadd.f32 %v392, %v368
    %v394 = vadd.f32 %v393, %v370
    %v395 = vadd.f32 %v394, %v372
    %v396 = vadd.f32 %v395, %v374
    %v397 = vadd.f32 %v396, %v376
    %v398 = vadd.f32 %v397, %v378
    %v399 = vrot.slane %v398, 4
    %v400 = vadd.f32 %v398, %v399
    %v401 = vrot.slane %v400, 2
    %v402 = vadd.f32 %v400, %v401
    %v403 = vrot.slane %v402, 1
    %v404 = vadd.f32 %v402, %v403
    %v405 = vstv %s36
    %v406 = vadd.f32 %v391, %v405
    %v407 = vadd.f32 %v404, %v405
    %v410 = vcombine.low %v406, %v407
    %v412 = vunpack.c.l.s4 1966171168
    %v413 = vunpack.c.0.s8 %v412
    %v414 = vlaneseq
    %v415 = vshrl.u32 %v414, 7
    %v416 = vsub.s32 %v413, %v415
    %v417 = vrot.slane %v410, %v416
    %v419 = vunpack.c.l.s4 1966171168
    %v420 = vunpack.c.0.s8 %v419
    %v421 = vlaneseq
    %v422 = vshrl.u32 %v421, 7
    %v423 = vsub.s32 %v420, %v422
    %v424 = vrot.slane %v417, %v423
    %v426 = vlaneseq
    %vm427 = vcmp.ge.s32.totalorder %v426, 0
    %vm428 = vcmp.lt.s32.totalorder %v426, 256
    %vm429 = vmand %vm427, %vm428
    %430 = vst.msk [vmem:[#allocation3] sm:$0x3] %vm429, %v424
    // Predicated region
    $region18: #{tpu_custom_call.1} parent=1 // pred_check
      _
    $region19: #{tpu_custom_call.1} parent=1 // pred_check_branch
      %432 = sbr.rel (0) target = $region21
    $region20: #{tpu_custom_call.1} parent=1 // pred_region
      %s434 = ssub.s32 32, 32
      %435 = vsyncadd [#allocation4], %s434
      %s437 = sshll.u32 [#allocation3], 4
      %s438 = int_to_ptr.vmem [resolvable:$true] %s437
      %440 = dma.vmem_to_hbm [thread:$0]  %s438, 32, %s4, [#allocation4]
    $region21: #{tpu_custom_call.1} parent=1 // pred_fallthru
      _
    // Predicated region
    $region22: #{tpu_custom_call.1} parent=1 // pred_check
      _
    $region23: #{tpu_custom_call.1} parent=1 // pred_check_branch
      %442 = sbr.rel (0) target = $region25
    $region24: #{tpu_custom_call.1} parent=1 // pred_region
      %443 = dma.done [#allocation4], 32
    $region25: #{tpu_custom_call.1} parent=1 // pred_fallthru
      _
    %444 = vsyncpa [#allocation4], 1

</llo_original>
